<compile_context>
chip_gen: v5e
topology: v5e:2x2
jax: 0.10.0
libtpu: 0.0.40
codegen_flags: <defaults>
</compile_context>

<pallas_src>
import functools

import jax
import jax.numpy as jnp
import numpy as np
from jax.experimental import pallas as pl
from jax.experimental.pallas import tpu as pltpu

NO_SIZE = 3
PT_SIZE = 6
REMAINING_PT_SIZE = 11
TTD_SLACK_SIZE = 16
SEGMENTS = ((0, NO_SIZE),
            (NO_SIZE, PT_SIZE),
            (PT_SIZE, REMAINING_PT_SIZE),
            (REMAINING_PT_SIZE, TTD_SLACK_SIZE))
LAYERS = (48, 36, 36, 24, 24, 12)
EPS = 1e-5
LANE = 128
SUBLANE = 8


def _round_up(v, m):
    return (v + m - 1) // m * m


def _segment_avg_matrix(feat):
    """(F, F) constant A with A[j, k] = 1/|seg| iff j,k share a norm segment.

    x @ A yields per-position segment means (0 for the pass-through tail);
    ((x - mu)^2) @ A yields the biased per-position segment variance."""
    a = np.zeros((feat, feat), np.float32)
    for s, e in SEGMENTS:
        a[s:e, s:e] = 1.0 / (e - s)
    return jnp.asarray(a)


def ppo_kernel(x_ref, a_ref, *refs, matmul_dtype):
    # refs = (w1, b1, ..., w7, b7, out_ref); the last layer's w/b are lane-padded.
    out_ref = refs[-1]
    wb = refs[:-1]

    x = x_ref[...]                                    # (TB, F) float32
    a = a_ref[...]                                    # (F, F)  float32

    # InstanceNorm1d statistics on the (otherwise idle) MXU.
    mu = jnp.dot(x, a, preferred_element_type=jnp.float32)   # 0 for tail positions
    d = x - mu                                                # tail: d = x
    var = jnp.dot(d * d, a, preferred_element_type=jnp.float32)  # biased var

    col = jax.lax.broadcasted_iota(jnp.int32, x.shape, 1)
    scale = jnp.where(col >= TTD_SLACK_SIZE, 1.0, jax.lax.rsqrt(var + EPS))
    h = d * scale                                     # normalized segs + pass-through tail

    # MLP: Linear/Tanh stack; final (lane-padded) Linear has no activation.
    n_layers = len(wb) // 2
    for i in range(n_layers):
        w = wb[2 * i][...].astype(matmul_dtype)       # (d_in, d_out)
        b = wb[2 * i + 1][...]                        # (1, d_out) f32
        h = jnp.dot(h.astype(matmul_dtype), w,
                    preferred_element_type=jnp.float32) + b
        if i < n_layers - 1:
            h = jnp.tanh(h)

    out_ref[...] = h.astype(out_ref.dtype)


def init_params(key, input_size, output_size):
    """Deterministic PyTorch-Linear-style init: U(-1/sqrt(fan_in), 1/sqrt(fan_in))."""
    dims = [input_size] + list(LAYERS) + [output_size]
    params = []
    for i in range(len(dims) - 1):
        key, kw, kb = jax.random.split(key, 3)
        bound = 1.0 / (dims[i] ** 0.5)
        w = jax.random.uniform(kw, (dims[i], dims[i + 1]), jnp.float32, -bound, bound)
        b = jax.random.uniform(kb, (1, dims[i + 1]), jnp.float32, -bound, bound)
        params += [w, b]
    return params


def ppo_network_forward(x, params, output_size, *,
                        block_rows=512, matmul_dtype=jnp.float32):
    """x: (B, 1, F) float32 (PyTorch NCL layout, C=1). Returns (B, output_size)."""
    B = x.shape[0]
    feat = x.shape[-1]
    assert x.shape[1] == 1, "channel dim must be 1 (required by the PyTorch forward)"
    assert feat >= TTD_SLACK_SIZE, "input feature dim must be >= 16"

    x2d = x.reshape(B, feat).astype(jnp.float32)

    # Row tile: multiple of 8 sublanes; no larger than needed for small batches.
    tb = min(_round_up(block_rows, SUBLANE), _round_up(B, SUBLANE))
    b_pad = _round_up(B, tb)
    if b_pad != B:
        x2d = jnp.pad(x2d, ((0, b_pad - B), (0, 0)))

    # Lane-dense output: pad the final Linear to a multiple of 128 lanes so the
    # output tile is written with full-width (unmasked) vector stores.
    out_pad = _round_up(output_size, LANE)
    pad_n = out_pad - output_size
    w_last, b_last = params[-2], params[-1]
    padded_params = list(params[:-2]) + [
        jnp.pad(w_last, ((0, 0), (0, pad_n))),
        jnp.pad(b_last, ((0, 0), (0, pad_n))),
    ]

    seg_avg = _segment_avg_matrix(feat)

    # x is streamed per row tile; all constants get a constant index_map so they
    # are DMA'd once and stay resident in VMEM across grid steps.
    in_specs = ([pl.BlockSpec((tb, feat), lambda i: (i, 0)),
                 pl.BlockSpec(seg_avg.shape, lambda i: (0, 0))]
                + [pl.BlockSpec(p.shape, lambda i: (0, 0)) for p in padded_params])

    out = pl.pallas_call(
        functools.partial(ppo_kernel, matmul_dtype=matmul_dtype),
        out_shape=jax.ShapeDtypeStruct((b_pad, out_pad), jnp.float32),
        grid=(b_pad // tb,),
        in_specs=in_specs,
        out_specs=pl.BlockSpec((tb, out_pad), lambda i: (i, 0)),
        compiler_params=pltpu.CompilerParams(
            dimension_semantics=("parallel",)),   # shard row tiles across TCs (v7x)
    )(x2d, seg_avg, *padded_params)
    return out[:B, :output_size]


def ref_forward(x, params):
    """Pure-JAX reference mirroring the PyTorch forward semantics."""
    B = x.shape[0]
    xf = x.reshape(B, -1).astype(jnp.float32)

    def inorm(seg):
        mu = seg.mean(-1, keepdims=True)
        var = ((seg - mu) ** 2).mean(-1, keepdims=True)
        return (seg - mu) / jnp.sqrt(var + EPS)

    h = jnp.concatenate(
        [inorm(xf[:, :NO_SIZE]),
         inorm(xf[:, NO_SIZE:PT_SIZE]),
         inorm(xf[:, PT_SIZE:REMAINING_PT_SIZE]),
         inorm(xf[:, REMAINING_PT_SIZE:TTD_SLACK_SIZE]),
         xf[:, TTD_SLACK_SIZE:]],
        axis=-1,
    )
    n = len(params) // 2
    for i in range(n):
        h = jnp.dot(h, params[2 * i],
                    precision=jax.lax.Precision.HIGHEST) + params[2 * i + 1]
        if i < n - 1:
            h = jnp.tanh(h)
    return h


if __name__ == "__main__":
    input_size = 24     # total feature dim F (>= 16; rest = F - 16 pass-through features)
    output_size = 4
    batch = 2

    key = jax.random.PRNGKey(0)
    k_x, k_p, k_x2 = jax.random.split(key, 3)
    x = jax.random.normal(k_x, (batch, 1, input_size), dtype=jnp.float32)
    params = init_params(k_p, input_size, output_size)

    # Small-batch run (single grid step, rows padded 2 -> 8).
    out = jax.block_until_ready(ppo_network_forward(x, params, output_size))
    ref = ref_forward(x, params)
    assert out.shape == (batch, output_size)
    assert jnp.allclose(out, ref, atol=1e-4, rtol=1e-4), "mismatch vs reference (small)"

    # Multi-step grid path: 1030 rows, 256-row tiles -> 5 grid steps with padding.
    x_big = jax.random.normal(k_x2, (1030, 1, input_size), dtype=jnp.float32)
    out_big = jax.block_until_ready(
        ppo_network_forward(x_big, params, output_size, block_rows=256))
    ref_big = ref_forward(x_big, params)
    assert out_big.shape == (1030, output_size)
    assert jnp.allclose(out_big, ref_big, atol=1e-4, rtol=1e-4), "mismatch vs reference (big)"

    # bf16 matmul operands (f32 accumulation) -- the v6e/v7x deployment config.
    out_bf16 = jax.block_until_ready(
        ppo_network_forward(x_big, params, output_size, block_rows=256,
                            matmul_dtype=jnp.bfloat16))
    assert jnp.allclose(out_bf16, ref_big, atol=5e-2, rtol=5e-2), "mismatch vs reference (bf16)"

    print("KERNEL_OK")
</pallas_src>

<mosaic_0001>
module attributes {stable_mosaic.version = 11 : i64} {
  func.func @ppo_kernel(%arg0: i32, %arg1: memref<8x24xf32, #tpu.memory_space<vmem>>, %arg2: memref<24x24xf32, #tpu.memory_space<vmem>>, %arg3: memref<24x48xf32, #tpu.memory_space<vmem>>, %arg4: memref<1x48xf32, #tpu.memory_space<vmem>>, %arg5: memref<48x36xf32, #tpu.memory_space<vmem>>, %arg6: memref<1x36xf32, #tpu.memory_space<vmem>>, %arg7: memref<36x36xf32, #tpu.memory_space<vmem>>, %arg8: memref<1x36xf32, #tpu.memory_space<vmem>>, %arg9: memref<36x24xf32, #tpu.memory_space<vmem>>, %arg10: memref<1x24xf32, #tpu.memory_space<vmem>>, %arg11: memref<24x24xf32, #tpu.memory_space<vmem>>, %arg12: memref<1x24xf32, #tpu.memory_space<vmem>>, %arg13: memref<24x12xf32, #tpu.memory_space<vmem>>, %arg14: memref<1x12xf32, #tpu.memory_space<vmem>>, %arg15: memref<12x128xf32, #tpu.memory_space<vmem>>, %arg16: memref<1x128xf32, #tpu.memory_space<vmem>>, %arg17: memref<8x128xf32, #tpu.memory_space<vmem>>) attributes {dimension_semantics = [#tpu.dimension_semantics<parallel>], iteration_bounds = array<i64: 1>, scalar_prefetch = 0 : i64, scratch_operands = 0 : i64, tpu.core_type = #tpu.core_type<tc>, window_params = [{transform_indices = @transform_0, window_bounds = array<i64: 8, 24>}, {pipeline_mode = #tpu.pipeline_mode<synchronous>, transform_indices = @transform_1, window_bounds = array<i64: 24, 24>}, {pipeline_mode = #tpu.pipeline_mode<synchronous>, transform_indices = @transform_2, window_bounds = array<i64: 24, 48>}, {pipeline_mode = #tpu.pipeline_mode<synchronous>, transform_indices = @transform_3, window_bounds = array<i64: 1, 48>}, {pipeline_mode = #tpu.pipeline_mode<synchronous>, transform_indices = @transform_4, window_bounds = array<i64: 48, 36>}, {pipeline_mode = #tpu.pipeline_mode<synchronous>, transform_indices = @transform_5, window_bounds = array<i64: 1, 36>}, {pipeline_mode = #tpu.pipeline_mode<synchronous>, transform_indices = @transform_6, window_bounds = array<i64: 36, 36>}, {pipeline_mode = #tpu.pipeline_mode<synchronous>, transform_indices = @transform_7, window_bounds = array<i64: 1, 36>}, {pipeline_mode = #tpu.pipeline_mode<synchronous>, transform_indices = @transform_8, window_bounds = array<i64: 36, 24>}, {pipeline_mode = #tpu.pipeline_mode<synchronous>, transform_indices = @transform_9, window_bounds = array<i64: 1, 24>}, {pipeline_mode = #tpu.pipeline_mode<synchronous>, transform_indices = @transform_10, window_bounds = array<i64: 24, 24>}, {pipeline_mode = #tpu.pipeline_mode<synchronous>, transform_indices = @transform_11, window_bounds = array<i64: 1, 24>}, {pipeline_mode = #tpu.pipeline_mode<synchronous>, transform_indices = @transform_12, window_bounds = array<i64: 24, 12>}, {pipeline_mode = #tpu.pipeline_mode<synchronous>, transform_indices = @transform_13, window_bounds = array<i64: 1, 12>}, {pipeline_mode = #tpu.pipeline_mode<synchronous>, transform_indices = @transform_14, window_bounds = array<i64: 12, 128>}, {pipeline_mode = #tpu.pipeline_mode<synchronous>, transform_indices = @transform_15, window_bounds = array<i64: 1, 128>}, {transform_indices = @transform_16, window_bounds = array<i64: 8, 128>}]} {
    %c0 = arith.constant 0 : index
    %c0_0 = arith.constant 0 : index
    %0 = vector.load %arg1[%c0, %c0_0] : memref<8x24xf32, #tpu.memory_space<vmem>>, vector<8x24xf32>
    %c0_1 = arith.constant 0 : index
    %c0_2 = arith.constant 0 : index
    %1 = vector.load %arg2[%c0_1, %c0_2] : memref<24x24xf32, #tpu.memory_space<vmem>>, vector<24x24xf32>
    %cst = arith.constant dense<0.000000e+00> : vector<8x24xf32>
    %2 = tpu.matmul %0, %1, %cst {dimension_numbers = #tpu.dot_dimension_numbers<[1], [0], [0], [1], [0, 0, 1, 1], [], []>} : vector<8x24xf32>, vector<24x24xf32>, vector<8x24xf32> -> vector<8x24xf32>
    %3 = arith.subf %0, %2 : vector<8x24xf32>
    %4 = arith.mulf %3, %3 : vector<8x24xf32>
    %cst_3 = arith.constant dense<0.000000e+00> : vector<8x24xf32>
    %5 = tpu.matmul %4, %1, %cst_3 {dimension_numbers = #tpu.dot_dimension_numbers<[1], [0], [0], [1], [0, 0, 1, 1], [], []>} : vector<8x24xf32>, vector<24x24xf32>, vector<8x24xf32> -> vector<8x24xf32>
    %6 = tpu.iota {dimensions = array<i32: 1>} : vector<8x24xi32>
    %c16_i32 = arith.constant 16 : i32
    %7 = vector.broadcast %c16_i32 : i32 to vector<8x24xi32>
    %8 = arith.cmpi sge, %6, %7 : vector<8x24xi32>
    %cst_4 = arith.constant 9.99999974E-6 : f32
    %9 = vector.broadcast %cst_4 : f32 to vector<8x24xf32>
    %10 = arith.addf %5, %9 : vector<8x24xf32>
    %11 = math.rsqrt %10 : vector<8x24xf32>
    %cst_5 = arith.constant 1.000000e+00 : f32
    %12 = vector.broadcast %cst_5 : f32 to vector<8x24xf32>
    %13 = arith.select %8, %12, %11 : vector<8x24xi1>, vector<8x24xf32>
    %14 = arith.mulf %3, %13 : vector<8x24xf32>
    %c0_6 = arith.constant 0 : index
    %c0_7 = arith.constant 0 : index
    %15 = vector.load %arg3[%c0_6, %c0_7] : memref<24x48xf32, #tpu.memory_space<vmem>>, vector<24x48xf32>
    %c0_8 = arith.constant 0 : index
    %c0_9 = arith.constant 0 : index
    %16 = vector.load %arg4[%c0_8, %c0_9] : memref<1x48xf32, #tpu.memory_space<vmem>>, vector<1x48xf32>
    %cst_10 = arith.constant dense<0.000000e+00> : vector<8x48xf32>
    %17 = tpu.matmul %14, %15, %cst_10 {dimension_numbers = #tpu.dot_dimension_numbers<[1], [0], [0], [1], [0, 0, 1, 1], [], []>} : vector<8x24xf32>, vector<24x48xf32>, vector<8x48xf32> -> vector<8x48xf32>
    %18 = vector.broadcast %16 : vector<1x48xf32> to vector<8x48xf32>
    %19 = arith.addf %17, %18 : vector<8x48xf32>
    %20 = math.tanh %19 : vector<8x48xf32>
    %c0_11 = arith.constant 0 : index
    %c0_12 = arith.constant 0 : index
    %21 = vector.load %arg5[%c0_11, %c0_12] : memref<48x36xf32, #tpu.memory_space<vmem>>, vector<48x36xf32>
    %c0_13 = arith.constant 0 : index
    %c0_14 = arith.constant 0 : index
    %22 = vector.load %arg6[%c0_13, %c0_14] : memref<1x36xf32, #tpu.memory_space<vmem>>, vector<1x36xf32>
    %cst_15 = arith.constant dense<0.000000e+00> : vector<8x36xf32>
    %23 = tpu.matmul %20, %21, %cst_15 {dimension_numbers = #tpu.dot_dimension_numbers<[1], [0], [0], [1], [0, 0, 1, 1], [], []>} : vector<8x48xf32>, vector<48x36xf32>, vector<8x36xf32> -> vector<8x36xf32>
    %24 = vector.broadcast %22 : vector<1x36xf32> to vector<8x36xf32>
    %25 = arith.addf %23, %24 : vector<8x36xf32>
    %26 = math.tanh %25 : vector<8x36xf32>
    %c0_16 = arith.constant 0 : index
    %c0_17 = arith.constant 0 : index
    %27 = vector.load %arg7[%c0_16, %c0_17] : memref<36x36xf32, #tpu.memory_space<vmem>>, vector<36x36xf32>
    %c0_18 = arith.constant 0 : index
    %c0_19 = arith.constant 0 : index
    %28 = vector.load %arg8[%c0_18, %c0_19] : memref<1x36xf32, #tpu.memory_space<vmem>>, vector<1x36xf32>
    %cst_20 = arith.constant dense<0.000000e+00> : vector<8x36xf32>
    %29 = tpu.matmul %26, %27, %cst_20 {dimension_numbers = #tpu.dot_dimension_numbers<[1], [0], [0], [1], [0, 0, 1, 1], [], []>} : vector<8x36xf32>, vector<36x36xf32>, vector<8x36xf32> -> vector<8x36xf32>
    %30 = vector.broadcast %28 : vector<1x36xf32> to vector<8x36xf32>
    %31 = arith.addf %29, %30 : vector<8x36xf32>
    %32 = math.tanh %31 : vector<8x36xf32>
    %c0_21 = arith.constant 0 : index
    %c0_22 = arith.constant 0 : index
    %33 = vector.load %arg9[%c0_21, %c0_22] : memref<36x24xf32, #tpu.memory_space<vmem>>, vector<36x24xf32>
    %c0_23 = arith.constant 0 : index
    %c0_24 = arith.constant 0 : index
    %34 = vector.load %arg10[%c0_23, %c0_24] : memref<1x24xf32, #tpu.memory_space<vmem>>, vector<1x24xf32>
    %cst_25 = arith.constant dense<0.000000e+00> : vector<8x24xf32>
    %35 = tpu.matmul %32, %33, %cst_25 {dimension_numbers = #tpu.dot_dimension_numbers<[1], [0], [0], [1], [0, 0, 1, 1], [], []>} : vector<8x36xf32>, vector<36x24xf32>, vector<8x24xf32> -> vector<8x24xf32>
    %36 = vector.broadcast %34 : vector<1x24xf32> to vector<8x24xf32>
    %37 = arith.addf %35, %36 : vector<8x24xf32>
    %38 = math.tanh %37 : vector<8x24xf32>
    %c0_26 = arith.constant 0 : index
    %c0_27 = arith.constant 0 : index
    %39 = vector.load %arg11[%c0_26, %c0_27] : memref<24x24xf32, #tpu.memory_space<vmem>>, vector<24x24xf32>
    %c0_28 = arith.constant 0 : index
    %c0_29 = arith.constant 0 : index
    %40 = vector.load %arg12[%c0_28, %c0_29] : memref<1x24xf32, #tpu.memory_space<vmem>>, vector<1x24xf32>
    %cst_30 = arith.constant dense<0.000000e+00> : vector<8x24xf32>
    %41 = tpu.matmul %38, %39, %cst_30 {dimension_numbers = #tpu.dot_dimension_numbers<[1], [0], [0], [1], [0, 0, 1, 1], [], []>} : vector<8x24xf32>, vector<24x24xf32>, vector<8x24xf32> -> vector<8x24xf32>
    %42 = vector.broadcast %40 : vector<1x24xf32> to vector<8x24xf32>
    %43 = arith.addf %41, %42 : vector<8x24xf32>
    %44 = math.tanh %43 : vector<8x24xf32>
    %c0_31 = arith.constant 0 : index
    %c0_32 = arith.constant 0 : index
    %45 = vector.load %arg13[%c0_31, %c0_32] : memref<24x12xf32, #tpu.memory_space<vmem>>, vector<24x12xf32>
    %c0_33 = arith.constant 0 : index
    %c0_34 = arith.constant 0 : index
    %46 = vector.load %arg14[%c0_33, %c0_34] : memref<1x12xf32, #tpu.memory_space<vmem>>, vector<1x12xf32>
    %cst_35 = arith.constant dense<0.000000e+00> : vector<8x12xf32>
    %47 = tpu.matmul %44, %45, %cst_35 {dimension_numbers = #tpu.dot_dimension_numbers<[1], [0], [0], [1], [0, 0, 1, 1], [], []>} : vector<8x24xf32>, vector<24x12xf32>, vector<8x12xf32> -> vector<8x12xf32>
    %48 = vector.broadcast %46 : vector<1x12xf32> to vector<8x12xf32>
    %49 = arith.addf %47, %48 : vector<8x12xf32>
    %50 = math.tanh %49 : vector<8x12xf32>
    %c0_36 = arith.constant 0 : index
    %c0_37 = arith.constant 0 : index
    %51 = vector.load %arg15[%c0_36, %c0_37] : memref<12x128xf32, #tpu.memory_space<vmem>>, vector<12x128xf32>
    %c0_38 = arith.constant 0 : index
    %c0_39 = arith.constant 0 : index
    %52 = vector.load %arg16[%c0_38, %c0_39] : memref<1x128xf32, #tpu.memory_space<vmem>>, vector<1x128xf32>
    %cst_40 = arith.constant dense<0.000000e+00> : vector<8x128xf32>
    %53 = tpu.matmul %50, %51, %cst_40 {dimension_numbers = #tpu.dot_dimension_numbers<[1], [0], [0], [1], [0, 0, 1, 1], [], []>} : vector<8x12xf32>, vector<12x128xf32>, vector<8x128xf32> -> vector<8x128xf32>
    %54 = vector.broadcast %52 : vector<1x128xf32> to vector<8x128xf32>
    %55 = arith.addf %53, %54 : vector<8x128xf32>
    %c0_41 = arith.constant 0 : index
    %c0_42 = arith.constant 0 : index
    %56 = vector.load %arg17[%c0_41, %c0_42] : memref<8x128xf32, #tpu.memory_space<vmem>>, vector<8x128xf32>
    tpu.vector_store %arg17[%c0_41, %c0_42], %55 {strides = array<i32>} : memref<8x128xf32, #tpu.memory_space<vmem>>, vector<8x128xf32>,
    return
  }
  func.func @transform_0(%arg0: i32) -> (i32, i32) {
    %c0_i32 = arith.constant 0 : i32
    %c0_i32_0 = arith.constant 0 : i32
    return %arg0, %c0_i32 : i32, i32
  }
  func.func @transform_1(%arg0: i32) -> (i32, i32) {
    %c0_i32 = arith.constant 0 : i32
    %c0_i32_0 = arith.constant 0 : i32
    %c0_i32_1 = arith.constant 0 : i32
    return %c0_i32, %c0_i32_0 : i32, i32
  }
  func.func @transform_2(%arg0: i32) -> (i32, i32) {
    %c0_i32 = arith.constant 0 : i32
    %c0_i32_0 = arith.constant 0 : i32
    %c0_i32_1 = arith.constant 0 : i32
    return %c0_i32, %c0_i32_0 : i32, i32
  }
  func.func @transform_3(%arg0: i32) -> (i32, i32) {
    %c0_i32 = arith.constant 0 : i32
    %c0_i32_0 = arith.constant 0 : i32
    %c0_i32_1 = arith.constant 0 : i32
    return %c0_i32, %c0_i32_0 : i32, i32
  }
  func.func @transform_4(%arg0: i32) -> (i32, i32) {
    %c0_i32 = arith.constant 0 : i32
    %c0_i32_0 = arith.constant 0 : i32
    %c0_i32_1 = arith.constant 0 : i32
    return %c0_i32, %c0_i32_0 : i32, i32
  }
  func.func @transform_5(%arg0: i32) -> (i32, i32) {
    %c0_i32 = arith.constant 0 : i32
    %c0_i32_0 = arith.constant 0 : i32
    %c0_i32_1 = arith.constant 0 : i32
    return %c0_i32, %c0_i32_0 : i32, i32
  }
  func.func @transform_6(%arg0: i32) -> (i32, i32) {
    %c0_i32 = arith.constant 0 : i32
    %c0_i32_0 = arith.constant 0 : i32
    %c0_i32_1 = arith.constant 0 : i32
    return %c0_i32, %c0_i32_0 : i32, i32
  }
  func.func @transform_7(%arg0: i32) -> (i32, i32) {
    %c0_i32 = arith.constant 0 : i32
    %c0_i32_0 = arith.constant 0 : i32
    %c0_i32_1 = arith.constant 0 : i32
    return %c0_i32, %c0_i32_0 : i32, i32
  }
  func.func @transform_8(%arg0: i32) -> (i32, i32) {
    %c0_i32 = arith.constant 0 : i32
    %c0_i32_0 = arith.constant 0 : i32
    %c0_i32_1 = arith.constant 0 : i32
    return %c0_i32, %c0_i32_0 : i32, i32
  }
  func.func @transform_9(%arg0: i32) -> (i32, i32) {
    %c0_i32 = arith.constant 0 : i32
    %c0_i32_0 = arith.constant 0 : i32
    %c0_i32_1 = arith.constant 0 : i32
    return %c0_i32, %c0_i32_0 : i32, i32
  }
  func.func @transform_10(%arg0: i32) -> (i32, i32) {
    %c0_i32 = arith.constant 0 : i32
    %c0_i32_0 = arith.constant 0 : i32
    %c0_i32_1 = arith.constant 0 : i32
    return %c0_i32, %c0_i32_0 : i32, i32
  }
  func.func @transform_11(%arg0: i32) -> (i32, i32) {
    %c0_i32 = arith.constant 0 : i32
    %c0_i32_0 = arith.constant 0 : i32
    %c0_i32_1 = arith.constant 0 : i32
    return %c0_i32, %c0_i32_0 : i32, i32
  }
  func.func @transform_12(%arg0: i32) -> (i32, i32) {
    %c0_i32 = arith.constant 0 : i32
    %c0_i32_0 = arith.constant 0 : i32
    %c0_i32_1 = arith.constant 0 : i32
    return %c0_i32, %c0_i32_0 : i32, i32
  }
  func.func @transform_13(%arg0: i32) -> (i32, i32) {
    %c0_i32 = arith.constant 0 : i32
    %c0_i32_0 = arith.constant 0 : i32
    %c0_i32_1 = arith.constant 0 : i32
    return %c0_i32, %c0_i32_0 : i32, i32
  }
  func.func @transform_14(%arg0: i32) -> (i32, i32) {
    %c0_i32 = arith.constant 0 : i32
    %c0_i32_0 = arith.constant 0 : i32
    %c0_i32_1 = arith.constant 0 : i32
    return %c0_i32, %c0_i32_0 : i32, i32
  }
  func.func @transform_15(%arg0: i32) -> (i32, i32) {
    %c0_i32 = arith.constant 0 : i32
    %c0_i32_0 = arith.constant 0 : i32
    %c0_i32_1 = arith.constant 0 : i32
    return %c0_i32, %c0_i32_0 : i32, i32
  }
  func.func @transform_16(%arg0: i32) -> (i32, i32) {
    %c0_i32 = arith.constant 0 : i32
    %c0_i32_0 = arith.constant 0 : i32
    return %arg0, %c0_i32 : i32, i32
  }
}

</mosaic_0001>

<llo_original>
// kernel: tpu_custom_call.1
$region0: #{tpu_custom_call.1}
  #allocation0 [shape = 'u32[]', space=smem, size = 0x4, offset = 0x4, fixed_abs, tag = 'smem constant byte address 0x4 - core index']
  #allocation1 [shape = 'u32[72,128]{1,0:T(1,128)}', space=vmem, size = 0x9000, scoped, tag = 'internal scratch']
  %s0 = inlined_call_operand.hbm [shape: f32[8,24], index: 0, kind: input, shape index: {}]
  %s1 = inlined_call_operand.vmem [shape: f32[24,24], index: 1, kind: input, shape index: {}]
  %s2 = inlined_call_operand.vmem [shape: f32[24,48], index: 2, kind: input, shape index: {}]
  %s3 = inlined_call_operand.vmem [shape: f32[1,48], index: 3, kind: input, shape index: {}]
  %s4 = inlined_call_operand.vmem [shape: f32[48,36], index: 4, kind: input, shape index: {}]
  %s5 = inlined_call_operand.vmem [shape: f32[1,36], index: 5, kind: input, shape index: {}]
  %s6 = inlined_call_operand.vmem [shape: f32[36,36], index: 6, kind: input, shape index: {}]
  %s7 = inlined_call_operand.vmem [shape: f32[1,36], index: 7, kind: input, shape index: {}]
  %s8 = inlined_call_operand.vmem [shape: f32[36,24], index: 8, kind: input, shape index: {}]
  %s9 = inlined_call_operand.vmem [shape: f32[1,24], index: 9, kind: input, shape index: {}]
  %s10 = inlined_call_operand.vmem [shape: f32[24,24], index: 10, kind: input, shape index: {}]
  %s11 = inlined_call_operand.vmem [shape: f32[1,24], index: 11, kind: input, shape index: {}]
  %s12 = inlined_call_operand.vmem [shape: f32[24,12], index: 12, kind: input, shape index: {}]
  %s13 = inlined_call_operand.vmem [shape: f32[1,12], index: 13, kind: input, shape index: {}]
  %s14 = inlined_call_operand.vmem [shape: f32[12,128], index: 14, kind: input, shape index: {}]
  %s15 = inlined_call_operand.vmem [shape: f32[1,128], index: 15, kind: input, shape index: {}]
  %s16 = inlined_call_operand.hbm [shape: f32[8,128], index: 16, kind: output, shape index: {}]
  %s17 = sld [smem:[#allocation0]]
  $region78: #{tpu_custom_call.1} parent=0
    _
  %s19 = ssub.s32 1, %s17
  %s20 = scalar_select 0, %s19, %s17
  $region1: #{tpu_custom_call.1} parent=0
    #allocation2 [shape = 'u8[4096]{0}', space=vmem, size = 0x1000, scoped, tag = 'input window, operand 0, single buffered']
    #allocation3 [shape = 's32[1]{0}', space=sflag, size = 0x4, scoped, tag = 'scoped memory for tpu_custom_call.1']
    #allocation4 [shape = 's32[1]{0}', space=sflag, size = 0x4, scoped, tag = 'scoped memory for tpu_custom_call.1']
    #allocation5 [shape = 'u8[4096]{0}', space=vmem, size = 0x1000, scoped, tag = 'output window, operand 0, single buffered']
    %21 = vsyncpa [#allocation3], 0
    %22 = vsyncpa [#allocation4], 0
    // Predicated region
    $region2: #{tpu_custom_call.1} parent=1 // pred_check
      _
    $region3: #{tpu_custom_call.1} parent=1 // pred_check_branch
      %24 = sbr.rel (0) target = $region5
    $region4: #{tpu_custom_call.1} parent=1 // pred_region
      %26 = vsyncadd [#allocation3], 0
      %s28 = sshll.u32 %s0, 4
      %s29 = int_to_ptr.hbm [resolvable:$true] %s28
      %s30 = sshll.u32 [#allocation2], 4
      %s31 = int_to_ptr.vmem [resolvable:$true] %s30
      %33 = dma.hbm_to_vmem [thread:$0]  %s29, 128, %s31, [#allocation3]
    $region5: #{tpu_custom_call.1} parent=1 // pred_fallthru
      _
    // Predicated region
    $region6: #{tpu_custom_call.1} parent=1 // pred_check
      _
    $region7: #{tpu_custom_call.1} parent=1 // pred_check_branch
      %35 = sbr.rel (0) target = $region9
    $region8: #{tpu_custom_call.1} parent=1 // pred_region
      _
    $region9: #{tpu_custom_call.1} parent=1 // pred_fallthru
      _
    // Predicated region
    $region10: #{tpu_custom_call.1} parent=1 // pred_check
      _
    $region11: #{tpu_custom_call.1} parent=1 // pred_check_branch
      %37 = sbr.rel (0) target = $region13
    $region12: #{tpu_custom_call.1} parent=1 // pred_region
      _
    $region13: #{tpu_custom_call.1} parent=1 // pred_fallthru
      _
    // Predicated region
    $region14: #{tpu_custom_call.1} parent=1 // pred_check
      _
    $region15: #{tpu_custom_call.1} parent=1 // pred_check_branch
      %39 = sbr.rel (0) target = $region17
    $region16: #{tpu_custom_call.1} parent=1 // pred_region
      _
    $region17: #{tpu_custom_call.1} parent=1 // pred_fallthru
      _
    // Predicated region
    $region18: #{tpu_custom_call.1} parent=1 // pred_check
      _
    $region19: #{tpu_custom_call.1} parent=1 // pred_check_branch
      %41 = sbr.rel (0) target = $region21
    $region20: #{tpu_custom_call.1} parent=1 // pred_region
      _
    $region21: #{tpu_custom_call.1} parent=1 // pred_fallthru
      _
    // Predicated region
    $region22: #{tpu_custom_call.1} parent=1 // pred_check
      _
    $region23: #{tpu_custom_call.1} parent=1 // pred_check_branch
      %43 = sbr.rel (0) target = $region25
    $region24: #{tpu_custom_call.1} parent=1 // pred_region
      _
    $region25: #{tpu_custom_call.1} parent=1 // pred_fallthru
      _
    // Predicated region
    $region26: #{tpu_custom_call.1} parent=1 // pred_check
      _
    $region27: #{tpu_custom_call.1} parent=1 // pred_check_branch
      %45 = sbr.rel (0) target = $region29
    $region28: #{tpu_custom_call.1} parent=1 // pred_region
      _
    $region29: #{tpu_custom_call.1} parent=1 // pred_fallthru
      _
    // Predicated region
    $region30: #{tpu_custom_call.1} parent=1 // pred_check
      _
    $region31: #{tpu_custom_call.1} parent=1 // pred_check_branch
      %47 = sbr.rel (0) target = $region33
    $region32: #{tpu_custom_call.1} parent=1 // pred_region
      _
    $region33: #{tpu_custom_call.1} parent=1 // pred_fallthru
      _
    // Predicated region
    $region34: #{tpu_custom_call.1} parent=1 // pred_check
      _
    $region35: #{tpu_custom_call.1} parent=1 // pred_check_branch
      %49 = sbr.rel (0) target = $region37
    $region36: #{tpu_custom_call.1} parent=1 // pred_region
      _
    $region37: #{tpu_custom_call.1} parent=1 // pred_fallthru
      _
    // Predicated region
    $region38: #{tpu_custom_call.1} parent=1 // pred_check
      _
    $region39: #{tpu_custom_call.1} parent=1 // pred_check_branch
      %51 = sbr.rel (0) target = $region41
    $region40: #{tpu_custom_call.1} parent=1 // pred_region
      _
    $region41: #{tpu_custom_call.1} parent=1 // pred_fallthru
      _
    // Predicated region
    $region42: #{tpu_custom_call.1} parent=1 // pred_check
      _
    $region43: #{tpu_custom_call.1} parent=1 // pred_check_branch
      %53 = sbr.rel (0) target = $region45
    $region44: #{tpu_custom_call.1} parent=1 // pred_region
      _
    $region45: #{tpu_custom_call.1} parent=1 // pred_fallthru
      _
    // Predicated region
    $region46: #{tpu_custom_call.1} parent=1 // pred_check
      _
    $region47: #{tpu_custom_call.1} parent=1 // pred_check_branch
      %55 = sbr.rel (0) target = $region49
    $region48: #{tpu_custom_call.1} parent=1 // pred_region
      _
    $region49: #{tpu_custom_call.1} parent=1 // pred_fallthru
      _
    // Predicated region
    $region50: #{tpu_custom_call.1} parent=1 // pred_check
      _
    $region51: #{tpu_custom_call.1} parent=1 // pred_check_branch
      %57 = sbr.rel (0) target = $region53
    $region52: #{tpu_custom_call.1} parent=1 // pred_region
      _
    $region53: #{tpu_custom_call.1} parent=1 // pred_fallthru
      _
    // Predicated region
    $region54: #{tpu_custom_call.1} parent=1 // pred_check
      _
    $region55: #{tpu_custom_call.1} parent=1 // pred_check_branch
      %59 = sbr.rel (0) target = $region57
    $region56: #{tpu_custom_call.1} parent=1 // pred_region
      _
    $region57: #{tpu_custom_call.1} parent=1 // pred_fallthru
      _
    // Predicated region
    $region58: #{tpu_custom_call.1} parent=1 // pred_check
      _
    $region59: #{tpu_custom_call.1} parent=1 // pred_check_branch
      %61 = sbr.rel (0) target = $region61
    $region60: #{tpu_custom_call.1} parent=1 // pred_region
      _
    $region61: #{tpu_custom_call.1} parent=1 // pred_fallthru
      _
    // Predicated region
    $region62: #{tpu_custom_call.1} parent=1 // pred_check
      _
    $region63: #{tpu_custom_call.1} parent=1 // pred_check_branch
      %63 = sbr.rel (0) target = $region65
    $region64: #{tpu_custom_call.1} parent=1 // pred_region
      _
    $region65: #{tpu_custom_call.1} parent=1 // pred_fallthru
      _
    // Predicated region
    $region66: #{tpu_custom_call.1} parent=1 // pred_check
      _
    $region67: #{tpu_custom_call.1} parent=1 // pred_check_branch
      %65 = sbr.rel (0) target = $region69
    $region68: #{tpu_custom_call.1} parent=1 // pred_region
      %67 = dma.done [#allocation3], 128
    $region69: #{tpu_custom_call.1} parent=1 // pred_fallthru
      _
    %v68 = vld [vmem:[#allocation2] sm:$0xff]
    %v69 = vld [vmem:[%s1] sm:$0xff]
    %v70 = vld [vmem:[%s1 + $0x8] sm:$0xff]
    %v71 = vld [vmem:[%s1 + $0x10] sm:$0xff]
    %vm72 = vcmask 195584
    %v74 = vsel %vm72, %v68, 0
    %76 = vmatpush.msra.mxu0 0.0
    %77 = vmatpush.msra.mxu0 0.0
    %78 = vmatpush.msra.mxu0 0.0
    %79 = vmatpush.msra.mxu0 0.0
    %80 = vmatpush.msra.mxu0 0.0
    %81 = vmatpush.msra.mxu0 0.0
    %82 = vmatpush.msra.mxu0 0.0
    %83 = vmatpush.msra.mxu0 0.0
    %84 = vmatpush.msra.mxu0 0.0
    %85 = vmatpush.msra.mxu0 0.0
    %86 = vmatpush.msra.mxu0 0.0
    %87 = vmatpush.msra.mxu0 0.0
    %88 = vmatpush.msra.mxu0 0.0
    %89 = vmatpush.msra.mxu0 %v71
    %90 = vmatpush.msra.mxu0 %v70
    %91 = vmatpush.msra.mxu0 %v69
    %92 = vmatmul.f32.gmra.mxu0 %v74
    %v93 = vpop.f32.mrf.mxu0
    %v94 = vadd.f32 0.0, %v93
    %95 = vdwg.mxu0
    %v96 = vsub.f32 %v68, %v94
    %v97 = vmul.f32 %v96, %v96
    %v98 = vlaneseq
    %v99 = vand.u32 %v98, 127
    %vm100 = vcmp.ge.s32.totalorder %v99, 16
    %v102 = vsel %vm72, %v97, 0
    %104 = vmatpush.msra.mxu0 0.0
    %105 = vmatpush.msra.mxu0 0.0
    %106 = vmatpush.msra.mxu0 0.0
    %107 = vmatpush.msra.mxu0 0.0
    %108 = vmatpush.msra.mxu0 0.0
    %109 = vmatpush.msra.mxu0 0.0
    %110 = vmatpush.msra.mxu0 0.0
    %111 = vmatpush.msra.mxu0 0.0
    %112 = vmatpush.msra.mxu0 0.0
    %113 = vmatpush.msra.mxu0 0.0
    %114 = vmatpush.msra.mxu0 0.0
    %115 = vmatpush.msra.mxu0 0.0
    %116 = vmatpush.msra.mxu0 0.0
    %117 = vmatpush.msra.mxu0 %v71
    %118 = vmatpush.msra.mxu0 %v70
    %119 = vmatpush.msra.mxu0 %v69
    %120 = vmatmul.f32.gmra.mxu0 %v102
    %v121 = vpop.f32.mrf.mxu0
    %v122 = vadd.f32 1e-05, %v121
    %123 = vdwg.mxu0
    %v124 = vrsqrt.pop %v122
    %v125 = vmul.f32 %v124, %v122
    %v126 = vmul.f32 %v125, %v124
    %v127 = vmul.f32 0.5, %v126
    %v128 = vsub.f32 1.5, %v127
    %v129 = vmul.f32 %v124, %v128
    %vm130 = vweird.f32 %v122
    %vm131 = vweird.f32 %v124
    %vm132 = vmor %vm130, %vm131
    %v133 = vsel %vm132, %v124, %v129
    %v134 = vsel %vm100, 1.0, %v133
    %v135 = vmul.f32 %v96, %v134
    %v136 = vld [vmem:[%s2] sm:$0xff]
    %v137 = vld [vmem:[%s2 + $0x8] sm:$0xff]
    %v138 = vld [vmem:[%s2 + $0x10] sm:$0xff]
    %v139 = vld [vmem:[%s3] sm:$0x1]
    %v141 = vperm.slane %v139, 0
    %v144 = vsel %vm72, %v135, 0
    %146 = vmatpush.msra.mxu0 0.0
    %147 = vmatpush.msra.mxu0 0.0
    %148 = vmatpush.msra.mxu0 0.0
    %149 = vmatpush.msra.mxu0 0.0
    %150 = vmatpush.msra.mxu0 0.0
    %151 = vmatpush.msra.mxu0 0.0
    %152 = vmatpush.msra.mxu0 0.0
    %153 = vmatpush.msra.mxu0 0.0
    %154 = vmatpush.msra.mxu0 0.0
    %155 = vmatpush.msra.mxu0 0.0
    %156 = vmatpush.msra.mxu0 0.0
    %157 = vmatpush.msra.mxu0 0.0
    %158 = vmatpush.msra.mxu0 0.0
    %159 = vmatpush.msra.mxu0 %v138
    %160 = vmatpush.msra.mxu0 %v137
    %161 = vmatpush.msra.mxu0 %v136
    %162 = vmatmul.f32.gmra.mxu0 %v144
    %v163 = vpop.f32.mrf.mxu0
    %v164 = vadd.f32 %v141, %v163
    %165 = vdwg.mxu0
    %v166 = vtanh.pop %v164
    %v167 = vld [vmem:[%s4] sm:$0xff]
    %v168 = vld [vmem:[%s4 + $0x8] sm:$0xff]
    %v169 = vld [vmem:[%s4 + $0x10] sm:$0xff]
    %v170 = vld [vmem:[%s4 + $0x18] sm:$0xff]
    %v171 = vld [vmem:[%s4 + $0x20] sm:$0xff]
    %v172 = vld [vmem:[%s4 + $0x28] sm:$0xff]
    %v173 = vld [vmem:[%s5] sm:$0x1]
    %v175 = vperm.slane %v173, 0
    %vm177 = vcmask 392192
    %v179 = vsel %vm177, %v166, 0
    %181 = vmatpush.msra.mxu0 0.0
    %182 = vmatpush.msra.mxu0 0.0
    %183 = vmatpush.msra.mxu0 0.0
    %184 = vmatpush.msra.mxu0 0.0
    %185 = vmatpush.msra.mxu0 0.0
    %186 = vmatpush.msra.mxu0 0.0
    %187 = vmatpush.msra.mxu0 0.0
    %188 = vmatpush.msra.mxu0 0.0
    %189 = vmatpush.msra.mxu0 0.0
    %190 = vmatpush.msra.mxu0 0.0
    %191 = vmatpush.msra.mxu0 %v172
    %192 = vmatpush.msra.mxu0 %v171
    %193 = vmatpush.msra.mxu0 %v170
    %194 = vmatpush.msra.mxu0 %v169
    %195 = vmatpush.msra.mxu0 %v168
    %196 = vmatpush.msra.mxu0 %v167
    %197 = vmatmul.f32.gmra.mxu0 %v179
    %v198 = vpop.f32.mrf.mxu0
    %v199 = vadd.f32 %v175, %v198
    %200 = vdwg.mxu0
    %v201 = vtanh.pop %v199
    %v202 = vld [vmem:[%s6] sm:$0xff]
    %v203 = vld [vmem:[%s6 + $0x8] sm:$0xff]
    %v204 = vld [vmem:[%s6 + $0x10] sm:$0xff]
    %v205 = vld [vmem:[%s6 + $0x18] sm:$0xff]
    %v206 = vld [vmem:[%s6 + $0x20] sm:$0xf]
    %v207 = vld [vmem:[%s7] sm:$0x1]
    %v209 = vperm.slane %v207, 0
    %vm211 = vcmask 293888
    %v213 = vsel %vm211, %v201, 0
    %vm215 = vcmask 1043456
    %v217 = vsel %vm215, %v206, 0
    %219 = vmatpush.msra.mxu0 0.0
    %220 = vmatpush.msra.mxu0 0.0
    %221 = vmatpush.msra.mxu0 0.0
    %222 = vmatpush.msra.mxu0 0.0
    %223 = vmatpush.msra.mxu0 0.0
    %224 = vmatpush.msra.mxu0 0.0
    %225 = vmatpush.msra.mxu0 0.0
    %226 = vmatpush.msra.mxu0 0.0
    %227 = vmatpush.msra.mxu0 0.0
    %228 = vmatpush.msra.mxu0 0.0
    %229 = vmatpush.msra.mxu0 0.0
    %230 = vmatpush.msra.mxu0 %v217
    %231 = vmatpush.msra.mxu0 %v205
    %232 = vmatpush.msra.mxu0 %v204
    %233 = vmatpush.msra.mxu0 %v203
    %234 = vmatpush.msra.mxu0 %v202
    %235 = vmatmul.f32.gmra.mxu0 %v213
    %v236 = vpop.f32.mrf.mxu0
    %v237 = vadd.f32 %v209, %v236
    %238 = vdwg.mxu0
    %v239 = vtanh.pop %v237
    %v240 = vld [vmem:[%s8] sm:$0xff]
    %v241 = vld [vmem:[%s8 + $0x8] sm:$0xff]
    %v242 = vld [vmem:[%s8 + $0x10] sm:$0xff]
    %v243 = vld [vmem:[%s8 + $0x18] sm:$0xff]
    %v244 = vld [vmem:[%s8 + $0x20] sm:$0xf]
    %v245 = vld [vmem:[%s9] sm:$0x1]
    %v247 = vperm.slane %v245, 0
    %v250 = vsel %vm211, %v239, 0
    %v253 = vsel %vm215, %v244, 0
    %255 = vmatpush.msra.mxu0 0.0
    %256 = vmatpush.msra.mxu0 0.0
    %257 = vmatpush.msra.mxu0 0.0
    %258 = vmatpush.msra.mxu0 0.0
    %259 = vmatpush.msra.mxu0 0.0
    %260 = vmatpush.msra.mxu0 0.0
    %261 = vmatpush.msra.mxu0 0.0
    %262 = vmatpush.msra.mxu0 0.0
    %263 = vmatpush.msra.mxu0 0.0
    %264 = vmatpush.msra.mxu0 0.0
    %265 = vmatpush.msra.mxu0 0.0
    %266 = vmatpush.msra.mxu0 %v253
    %267 = vmatpush.msra.mxu0 %v243
    %268 = vmatpush.msra.mxu0 %v242
    %269 = vmatpush.msra.mxu0 %v241
    %270 = vmatpush.msra.mxu0 %v240
    %271 = vmatmul.f32.gmra.mxu0 %v250
    %v272 = vpop.f32.mrf.mxu0
    %v273 = vadd.f32 %v247, %v272
    %274 = vdwg.mxu0
    %v275 = vtanh.pop %v273
    %v276 = vld [vmem:[%s10] sm:$0xff]
    %v277 = vld [vmem:[%s10 + $0x8] sm:$0xff]
    %v278 = vld [vmem:[%s10 + $0x10] sm:$0xff]
    %v279 = vld [vmem:[%s11] sm:$0x1]
    %v281 = vperm.slane %v279, 0
    %v284 = vsel %vm72, %v275, 0
    %286 = vmatpush.msra.mxu0 0.0
    %287 = vmatpush.msra.mxu0 0.0
    %288 = vmatpush.msra.mxu0 0.0
    %289 = vmatpush.msra.mxu0 0.0
    %290 = vmatpush.msra.mxu0 0.0
    %291 = vmatpush.msra.mxu0 0.0
    %292 = vmatpush.msra.mxu0 0.0
    %293 = vmatpush.msra.mxu0 0.0
    %294 = vmatpush.msra.mxu0 0.0
    %295 = vmatpush.msra.mxu0 0.0
    %296 = vmatpush.msra.mxu0 0.0
    %297 = vmatpush.msra.mxu0 0.0
    %298 = vmatpush.msra.mxu0 0.0
    %299 = vmatpush.msra.mxu0 %v278
    %300 = vmatpush.msra.mxu0 %v277
    %301 = vmatpush.msra.mxu0 %v276
    %302 = vmatmul.f32.gmra.mxu0 %v284
    %v303 = vpop.f32.mrf.mxu0
    %v304 = vadd.f32 %v281, %v303
    %305 = vdwg.mxu0
    %v306 = vtanh.pop %v304
    %v307 = vld [vmem:[%s12] sm:$0xff]
    %v308 = vld [vmem:[%s12 + $0x8] sm:$0xff]
    %v309 = vld [vmem:[%s12 + $0x10] sm:$0xff]
    %v310 = vld [vmem:[%s13] sm:$0x1]
    %v312 = vperm.slane %v310, 0
    %v315 = vsel %vm72, %v306, 0
    %317 = vmatpush.msra.mxu0 0.0
    %318 = vmatpush.msra.mxu0 0.0
    %319 = vmatpush.msra.mxu0 0.0
    %320 = vmatpush.msra.mxu0 0.0
    %321 = vmatpush.msra.mxu0 0.0
    %322 = vmatpush.msra.mxu0 0.0
    %323 = vmatpush.msra.mxu0 0.0
    %324 = vmatpush.msra.mxu0 0.0
    %325 = vmatpush.msra.mxu0 0.0
    %326 = vmatpush.msra.mxu0 0.0
    %327 = vmatpush.msra.mxu0 0.0
    %328 = vmatpush.msra.mxu0 0.0
    %329 = vmatpush.msra.mxu0 0.0
    %330 = vmatpush.msra.mxu0 %v309
    %331 = vmatpush.msra.mxu0 %v308
    %332 = vmatpush.msra.mxu0 %v307
    %333 = vmatmul.f32.gmra.mxu0 %v315
    %v334 = vpop.f32.mrf.mxu0
    %v335 = vadd.f32 %v312, %v334
    %336 = vdwg.mxu0
    %v337 = vtanh.pop %v335
    %v338 = vld [vmem:[%s14] sm:$0xff]
    %v339 = vld [vmem:[%s14 + $0x8] sm:$0xf]
    %v340 = vld [vmem:[%s15] sm:$0x1]
    %v342 = vperm.slane %v340, 0
    %vm344 = vcmask 97280
    %v346 = vsel %vm344, %v337, 0
    %v349 = vsel %vm215, %v339, 0
    %351 = vmatpush.msra.mxu0 0.0
    %352 = vmatpush.msra.mxu0 0.0
    %353 = vmatpush.msra.mxu0 0.0
    %354 = vmatpush.msra.mxu0 0.0
    %355 = vmatpush.msra.mxu0 0.0
    %356 = vmatpush.msra.mxu0 0.0
    %357 = vmatpush.msra.mxu0 0.0
    %358 = vmatpush.msra.mxu0 0.0
    %359 = vmatpush.msra.mxu0 0.0
    %360 = vmatpush.msra.mxu0 0.0
    %361 = vmatpush.msra.mxu0 0.0
    %362 = vmatpush.msra.mxu0 0.0
    %363 = vmatpush.msra.mxu0 0.0
    %364 = vmatpush.msra.mxu0 0.0
    %365 = vmatpush.msra.mxu0 %v349
    %366 = vmatpush.msra.mxu0 %v338
    %367 = vmatmul.f32.gmra.mxu0 %v346
    %v368 = vpop.f32.mrf.mxu0
    %v369 = vadd.f32 %v342, %v368
    %370 = vdwg.mxu0
    %371 = vst [vmem:[#allocation5] sm:$0xff] %v369
    // Predicated region
    $region70: #{tpu_custom_call.1} parent=1 // pred_check
      _
    $region71: #{tpu_custom_call.1} parent=1 // pred_check_branch
      %373 = sbr.rel (0) target = $region73
    $region72: #{tpu_custom_call.1} parent=1 // pred_region
      %375 = vsyncadd [#allocation4], 0
      %s377 = sshll.u32 [#allocation5], 4
      %s378 = int_to_ptr.vmem [resolvable:$true] %s377
      %s379 = sshll.u32 %s16, 4
      %s380 = int_to_ptr.hbm [resolvable:$true] %s379
      %382 = dma.vmem_to_hbm [thread:$0]  %s378, 128, %s380, [#allocation4]
    $region73: #{tpu_custom_call.1} parent=1 // pred_fallthru
      _
    // Predicated region
    $region74: #{tpu_custom_call.1} parent=1 // pred_check
      _
    $region75: #{tpu_custom_call.1} parent=1 // pred_check_branch
      %384 = sbr.rel (0) target = $region77
    $region76: #{tpu_custom_call.1} parent=1 // pred_region
      %386 = dma.done [#allocation4], 128
    $region77: #{tpu_custom_call.1} parent=1 // pred_fallthru
      _
    %387 = vsyncpa [#allocation3], 1
    %388 = vsyncpa [#allocation4], 1

</llo_original>
